<compile_context>
chip_gen: v7x
topology: tpu7x:2x2x1
jax: 0.10.0
libtpu: 0.0.40
codegen_flags: <defaults>
</compile_context>

<pallas_src>
import functools

import numpy as np

import jax
import jax.numpy as jnp
from jax.experimental import pallas as pl
from jax.experimental.pallas import tpu as pltpu


def conv3x3_kernel(w_ref, m_ref, x_ref, o_ref, *, H, W):
    # w_ref: SMEM (10,)   -> 3x3 taps row-major (dy*3+dx) + bias at [9]
    # m_ref: VMEM (4, HW) -> 0/1 border masks [left, right, top, bottom]
    # x_ref: VMEM (Nb, HW) flattened images (lane-dense)
    # o_ref: VMEM (Nb, HW)
    HW = H * W
    x = x_ref[...]                                   # one lane-dense load
    m = m_ref[...]                                   # (4, HW), tiny
    mL, mR, mT, mB = m[0:1], m[1:2], m[2:3], m[3:4]  # (1, HW) each; broadcast

    # Column-shifted sources via XLU lane rolls; wrapped border lanes are
    # zeroed by the masks (this is the padding=1 zero pad horizontally).
    xl = pltpu.roll(x, shift=1, axis=1) * mL         # col - 1
    xr = pltpu.roll(x, shift=HW - 1, axis=1) * mR    # col + 1

    # Horizontal weighted sum for kernel row dy (shared xl/x/xr across rows).
    def hsum(dy):
        return (w_ref[3 * dy] * xl
                + w_ref[3 * dy + 1] * x
                + w_ref[3 * dy + 2] * xr)

    acc = hsum(1) + w_ref[9]                                     # same row + bias
    acc = acc + pltpu.roll(hsum(0), shift=W, axis=1) * mT        # row - 1
    acc = acc + pltpu.roll(hsum(2), shift=HW - W, axis=1) * mB   # row + 1
    o_ref[...] = acc.astype(o_ref.dtype)


def _border_masks(H, W):
    """(4, H*W) f32 constant: [col>=1, col<=W-2, row>=1, row<=H-2]."""
    idx = np.arange(H * W)
    col = idx % W
    row = idx // W
    m = np.stack([col >= 1, col <= W - 2, row >= 1, row <= H - 2])
    return jnp.asarray(m.astype(np.float32))


def _pick_block_n(N, HW):
    """Batch rows handled per grid step.

    * Whole batch in one step only when it is genuinely tiny (nothing to
      overlap; avoids pointless grid overhead).
    * Otherwise: a multiple of 8 rows, capped at ~3 MiB of f32 per buffer so
      double-buffered in+out stays well inside v7x's scoped VMEM, and sized
      so the grid has >= 4 steps (>= 2 per v7x TensorCore) for pipeline
      overlap.  Ragged last blocks are fine (row-independent compute).
    """
    bytes_per_row = HW * 4
    if N * bytes_per_row <= (512 << 10):
        return N
    cap = max(8, (((3 << 20) // bytes_per_row) // 8) * 8)
    want = max(8, ((-(-N // 4)) // 8) * 8)           # ~cdiv(N,4), rounded to 8
    return min(cap, want)


def conv2d_1x1x3x3(x_nchw, weight, bias):
    """Equivalent of nn.Conv2d(1, 1, 3, stride=1, padding=1) forward.

    x_nchw: (N, 1, H, W) float32
    weight: (1, 1, 3, 3) float32
    bias:   (1,) float32
    returns (N, 1, H, W) float32
    """
    N, C, H, W = x_nchw.shape
    assert C == 1
    HW = H * W

    # Free (bitcast) reshape: images flattened to lane-dense H*W rows.
    x_flat = x_nchw.reshape(N, HW)
    w_flat = jnp.concatenate(
        [weight.reshape(-1), bias.reshape(-1)]).astype(jnp.float32)   # (10,)
    masks = _border_masks(H, W)                                       # (4, HW)

    block_n = _pick_block_n(N, HW)
    grid_n = pl.cdiv(N, block_n)

    # TODO(synk): for very large H*W (block_n cannot reach 8 rows within the
    # VMEM budget, mainly v7x) add a second grid axis blocking HW in
    # W-aligned 128-multiple chunks with a one-row halo for the vertical rolls.

    kernel = functools.partial(conv3x3_kernel, H=H, W=W)

    out = pl.pallas_call(
        kernel,
        out_shape=jax.ShapeDtypeStruct((N, HW), jnp.float32),
        grid_spec=pltpu.PrefetchScalarGridSpec(
            num_scalar_prefetch=0,
            grid=(grid_n,),
            in_specs=[
                pl.BlockSpec(memory_space=pltpu.SMEM),              # taps+bias
                pl.BlockSpec((4, HW), lambda n: (0, 0)),            # border masks (resident)
                pl.BlockSpec((block_n, HW), lambda n: (n, 0)),      # images
            ],
            out_specs=pl.BlockSpec((block_n, HW), lambda n: (n, 0)),
        ),
        compiler_params=pltpu.CompilerParams(
            dimension_semantics=("parallel",),
            vmem_limit_bytes=32 << 20),
    )(w_flat, masks, x_flat)
    return out.reshape(N, 1, H, W)                                   # free reshape


def _init_params(key):
    # Deterministic init mimicking PyTorch's default Conv2d init:
    # U(-sqrt(k), sqrt(k)) with k = 1 / (in_channels * 3 * 3) = 1/9.
    bound = (1.0 / 9.0) ** 0.5
    kw, kb = jax.random.split(key)
    weight = jax.random.uniform(kw, (1, 1, 3, 3), jnp.float32, -bound, bound)
    bias = jax.random.uniform(kb, (1,), jnp.float32, -bound, bound)
    return weight, bias


# TODO(synk): Net.tile_forward is a host-side Python patch loop (numpy anchors,
# in-place tensor writes) around the same conv; only forward() is implemented.

if __name__ == "__main__":
    key = jax.random.PRNGKey(0)
    kx, kp = jax.random.split(key)
    # Net.forward expects single-channel images: N=2, C=1, H=W=16.
    x = jax.random.normal(kx, (2, 1, 16, 16), jnp.float32)
    weight, bias = _init_params(kp)

    y = conv2d_1x1x3x3(x, weight, bias)
    jax.block_until_ready(y)

    # Cross-check against XLA's conv (same semantics as nn.Conv2d(1,1,3,1,1)).
    ref = jax.lax.conv_general_dilated(
        x, weight, window_strides=(1, 1), padding=((1, 1), (1, 1)),
        dimension_numbers=("NCHW", "OIHW", "NCHW")) + bias.reshape(1, 1, 1, 1)
    assert y.shape == (2, 1, 16, 16)
    assert jnp.allclose(y, ref, atol=1e-5, rtol=1e-5)

    print("KERNEL_OK")
</pallas_src>

<mosaic_0001>
module attributes {stable_mosaic.version = 11 : i64} {
  func.func @conv3x3_kernel(%arg0: i32, %arg1: memref<10xf32, #tpu.memory_space<smem>>, %arg2: memref<4x256xf32, #tpu.memory_space<vmem>>, %arg3: memref<2x256xf32, #tpu.memory_space<vmem>>, %arg4: memref<2x256xf32, #tpu.memory_space<vmem>>) attributes {dimension_semantics = [#tpu.dimension_semantics<parallel>], iteration_bounds = array<i64: 1>, scalar_prefetch = 0 : i64, scratch_operands = 0 : i64, tpu.core_type = #tpu.core_type<tc>, window_params = [{transform_indices = @transform_0, window_bounds = array<i64: 10>}, {pipeline_mode = #tpu.pipeline_mode<synchronous>, transform_indices = @transform_1, window_bounds = array<i64: 4, 256>}, {transform_indices = @transform_2, window_bounds = array<i64: 2, 256>}, {transform_indices = @transform_3, window_bounds = array<i64: 2, 256>}]} {
    %c0 = arith.constant 0 : index
    %c0_0 = arith.constant 0 : index
    %0 = vector.load %arg3[%c0, %c0_0] : memref<2x256xf32, #tpu.memory_space<vmem>>, vector<2x256xf32>
    %c0_1 = arith.constant 0 : index
    %c0_2 = arith.constant 0 : index
    %1 = vector.load %arg2[%c0_1, %c0_2] : memref<4x256xf32, #tpu.memory_space<vmem>>, vector<4x256xf32>
    %2 = vector.extract_strided_slice %1 {offsets = [0, 0], sizes = [1, 256], strides = [1, 1]} : vector<4x256xf32> to vector<1x256xf32>
    %3 = vector.extract_strided_slice %1 {offsets = [1, 0], sizes = [1, 256], strides = [1, 1]} : vector<4x256xf32> to vector<1x256xf32>
    %4 = vector.extract_strided_slice %1 {offsets = [2, 0], sizes = [1, 256], strides = [1, 1]} : vector<4x256xf32> to vector<1x256xf32>
    %5 = vector.extract_strided_slice %1 {offsets = [3, 0], sizes = [1, 256], strides = [1, 1]} : vector<4x256xf32> to vector<1x256xf32>
    %c1_i32 = arith.constant 1 : i32
    %6 = tpu.dynamic_rotate %0 by %c1_i32 dim 1 : vector<2x256xf32>, i32 -> vector<2x256xf32>
    %7 = vector.broadcast %2 : vector<1x256xf32> to vector<2x256xf32>
    %8 = arith.mulf %6, %7 : vector<2x256xf32>
    %c255_i32 = arith.constant 255 : i32
    %9 = tpu.dynamic_rotate %0 by %c255_i32 dim 1 : vector<2x256xf32>, i32 -> vector<2x256xf32>
    %10 = vector.broadcast %3 : vector<1x256xf32> to vector<2x256xf32>
    %11 = arith.mulf %9, %10 : vector<2x256xf32>
    %c3 = arith.constant 3 : index
    %12 = memref.load %arg1[%c3] : memref<10xf32, #tpu.memory_space<smem>>
    %13 = vector.broadcast %12 : f32 to vector<2x256xf32>
    %14 = arith.mulf %13, %8 : vector<2x256xf32>
    %c4 = arith.constant 4 : index
    %15 = memref.load %arg1[%c4] : memref<10xf32, #tpu.memory_space<smem>>
    %16 = vector.broadcast %15 : f32 to vector<2x256xf32>
    %17 = arith.mulf %16, %0 : vector<2x256xf32>
    %18 = arith.addf %14, %17 : vector<2x256xf32>
    %c5 = arith.constant 5 : index
    %19 = memref.load %arg1[%c5] : memref<10xf32, #tpu.memory_space<smem>>
    %20 = vector.broadcast %19 : f32 to vector<2x256xf32>
    %21 = arith.mulf %20, %11 : vector<2x256xf32>
    %22 = arith.addf %18, %21 : vector<2x256xf32>
    %c9 = arith.constant 9 : index
    %23 = memref.load %arg1[%c9] : memref<10xf32, #tpu.memory_space<smem>>
    %24 = vector.broadcast %23 : f32 to vector<2x256xf32>
    %25 = arith.addf %22, %24 : vector<2x256xf32>
    %c0_3 = arith.constant 0 : index
    %26 = memref.load %arg1[%c0_3] : memref<10xf32, #tpu.memory_space<smem>>
    %27 = vector.broadcast %26 : f32 to vector<2x256xf32>
    %28 = arith.mulf %27, %8 : vector<2x256xf32>
    %c1 = arith.constant 1 : index
    %29 = memref.load %arg1[%c1] : memref<10xf32, #tpu.memory_space<smem>>
    %30 = vector.broadcast %29 : f32 to vector<2x256xf32>
    %31 = arith.mulf %30, %0 : vector<2x256xf32>
    %32 = arith.addf %28, %31 : vector<2x256xf32>
    %c2 = arith.constant 2 : index
    %33 = memref.load %arg1[%c2] : memref<10xf32, #tpu.memory_space<smem>>
    %34 = vector.broadcast %33 : f32 to vector<2x256xf32>
    %35 = arith.mulf %34, %11 : vector<2x256xf32>
    %36 = arith.addf %32, %35 : vector<2x256xf32>
    %c16_i32 = arith.constant 16 : i32
    %37 = tpu.dynamic_rotate %36 by %c16_i32 dim 1 : vector<2x256xf32>, i32 -> vector<2x256xf32>
    %38 = vector.broadcast %4 : vector<1x256xf32> to vector<2x256xf32>
    %39 = arith.mulf %37, %38 : vector<2x256xf32>
    %40 = arith.addf %25, %39 : vector<2x256xf32>
    %c6 = arith.constant 6 : index
    %41 = memref.load %arg1[%c6] : memref<10xf32, #tpu.memory_space<smem>>
    %42 = vector.broadcast %41 : f32 to vector<2x256xf32>
    %43 = arith.mulf %42, %8 : vector<2x256xf32>
    %c7 = arith.constant 7 : index
    %44 = memref.load %arg1[%c7] : memref<10xf32, #tpu.memory_space<smem>>
    %45 = vector.broadcast %44 : f32 to vector<2x256xf32>
    %46 = arith.mulf %45, %0 : vector<2x256xf32>
    %47 = arith.addf %43, %46 : vector<2x256xf32>
    %c8 = arith.constant 8 : index
    %48 = memref.load %arg1[%c8] : memref<10xf32, #tpu.memory_space<smem>>
    %49 = vector.broadcast %48 : f32 to vector<2x256xf32>
    %50 = arith.mulf %49, %11 : vector<2x256xf32>
    %51 = arith.addf %47, %50 : vector<2x256xf32>
    %c240_i32 = arith.constant 240 : i32
    %52 = tpu.dynamic_rotate %51 by %c240_i32 dim 1 : vector<2x256xf32>, i32 -> vector<2x256xf32>
    %53 = vector.broadcast %5 : vector<1x256xf32> to vector<2x256xf32>
    %54 = arith.mulf %52, %53 : vector<2x256xf32>
    %55 = arith.addf %40, %54 : vector<2x256xf32>
    %c0_4 = arith.constant 0 : index
    %c0_5 = arith.constant 0 : index
    %56 = vector.load %arg4[%c0_4, %c0_5] : memref<2x256xf32, #tpu.memory_space<vmem>>, vector<2x256xf32>
    tpu.vector_store %arg4[%c0_4, %c0_5], %55 {strides = array<i32>} : memref<2x256xf32, #tpu.memory_space<vmem>>, vector<2x256xf32>,
    return
  }
  func.func @transform_0(%arg0: i32) -> i32 {
    %c0_i32 = arith.constant 0 : i32
    %c0_i32_0 = arith.constant 0 : i32
    return %c0_i32 : i32
  }
  func.func @transform_1(%arg0: i32) -> (i32, i32) {
    %c0_i32 = arith.constant 0 : i32
    %c0_i32_0 = arith.constant 0 : i32
    %c0_i32_1 = arith.constant 0 : i32
    return %c0_i32, %c0_i32_0 : i32, i32
  }
  func.func @transform_2(%arg0: i32) -> (i32, i32) {
    %c0_i32 = arith.constant 0 : i32
    %c0_i32_0 = arith.constant 0 : i32
    return %arg0, %c0_i32 : i32, i32
  }
  func.func @transform_3(%arg0: i32) -> (i32, i32) {
    %c0_i32 = arith.constant 0 : i32
    %c0_i32_0 = arith.constant 0 : i32
    return %arg0, %c0_i32 : i32, i32
  }
}

</mosaic_0001>

<llo_original>
// kernel: tpu_custom_call.1
$region0: #{tpu_custom_call.1}
  #allocation0 [shape = 'u32[]', space=smem, size = 0x4, offset = 0x4, fixed_abs, tag = 'smem constant byte address 0x4 - core index']
  #allocation1 [shape = 'u32[144,128]{1,0:T(1,128)}', space=vmem, size = 0x12000, scoped, tag = 'internal scratch']
  %s0 = inlined_call_operand.hbm [shape: f32[10], index: 0, kind: input, shape index: {}]
  %s1 = inlined_call_operand.hbm [shape: f32[4,256], index: 1, kind: input, shape index: {}]
  %s2 = inlined_call_operand.vmem [shape: f32[2,256], index: 2, kind: input, shape index: {}]
  %s3 = inlined_call_operand.hbm [shape: f32[2,256], index: 3, kind: output, shape index: {}]
  %s4 = sld [smem:[#allocation0]]
  $region30: #{tpu_custom_call.1} parent=0
    _
  %s6 = ssub.s32 1, %s4
  %s7 = scalar_select 0, %s6, %s4
  $region1: #{tpu_custom_call.1} parent=0
    #allocation2 [shape = 'u8[512]{0}', space=smem, size = 0x200, scoped, tag = 'input window, operand 0, single buffered']
    #allocation3 [shape = 's32[1]{0}', space=sflag, size = 0x4, scoped, tag = 'scoped memory for tpu_custom_call.1']
    #allocation4 [shape = 's32[1]{0}', space=sflag, size = 0x4, scoped, tag = 'scoped memory for tpu_custom_call.1']
    #allocation5 [shape = 's32[1]{0}', space=sflag, size = 0x4, scoped, tag = 'scoped memory for tpu_custom_call.1']
    #allocation6 [shape = 'u8[4096]{0}', space=vmem, size = 0x1000, scoped, tag = 'input window, operand 1, single buffered']
    #allocation7 [shape = 'u8[2048]{0}', space=vmem, size = 0x800, scoped, tag = 'output window, operand 0, single buffered']
    %8 = vsyncpa [#allocation5], 0
    %9 = vsyncpa [#allocation3], 0
    %10 = vsyncpa [#allocation4], 0
    // Predicated region
    $region2: #{tpu_custom_call.1} parent=1 // pred_check
      _
    $region3: #{tpu_custom_call.1} parent=1 // pred_check_branch
      %12 = sbr.rel (0) target = $region5
    $region4: #{tpu_custom_call.1} parent=1 // pred_region
      %s14 = ssub.s32 16, 16
      %15 = vsyncadd [#allocation5], %s14
      %18 = dma.hbm_to_smem %s0, 16, [#allocation2], [#allocation5]
    $region5: #{tpu_custom_call.1} parent=1 // pred_fallthru
      _
    // Predicated region
    $region6: #{tpu_custom_call.1} parent=1 // pred_check
      _
    $region7: #{tpu_custom_call.1} parent=1 // pred_check_branch
      %20 = sbr.rel (0) target = $region9
    $region8: #{tpu_custom_call.1} parent=1 // pred_region
      %s22 = ssub.s32 128, 128
      %23 = vsyncadd [#allocation3], %s22
      %s25 = sshll.u32 [#allocation6], 4
      %s26 = int_to_ptr.vmem [resolvable:$true] %s25
      %28 = dma.hbm_to_vmem [thread:$0]  %s1, 128, %s26, [#allocation3]
    $region9: #{tpu_custom_call.1} parent=1 // pred_fallthru
      _
    // Predicated region
    $region10: #{tpu_custom_call.1} parent=1 // pred_check
      _
    $region11: #{tpu_custom_call.1} parent=1 // pred_check_branch
      %30 = sbr.rel (0) target = $region13
    $region12: #{tpu_custom_call.1} parent=1 // pred_region
      _
    $region13: #{tpu_custom_call.1} parent=1 // pred_fallthru
      _
    // Predicated region
    $region14: #{tpu_custom_call.1} parent=1 // pred_check
      _
    $region15: #{tpu_custom_call.1} parent=1 // pred_check_branch
      %32 = sbr.rel (0) target = $region17
    $region16: #{tpu_custom_call.1} parent=1 // pred_region
      %33 = dma.done [#allocation5], 16
    $region17: #{tpu_custom_call.1} parent=1 // pred_fallthru
      _
    // Predicated region
    $region18: #{tpu_custom_call.1} parent=1 // pred_check
      _
    $region19: #{tpu_custom_call.1} parent=1 // pred_check_branch
      %35 = sbr.rel (0) target = $region21
    $region20: #{tpu_custom_call.1} parent=1 // pred_region
      %36 = dma.done [#allocation3], 128
    $region21: #{tpu_custom_call.1} parent=1 // pred_fallthru
      _
    %37 = sfence
    %v38 = vld [vmem:[%s2] sm:$0xf]
    %v39 = vld [vmem:[#allocation6] sm:$0xff]
    %v42 = vunpack.c.l.s4 1983009808
    %v43 = vunpack.c.0.s8 %v42
    %v44 = vlaneseq
    %v45 = vshrl.u32 %v44, 7
    %v46 = vsub.s32 %v43, %v45
    %v47 = vrot.slane %v38, %v46
    %v48 = vcombine.high %v47, %v47
    %51 = vrot.lane.b32.xlu0 %v47, 1
    %v52 = vpop.permute.xlu0 %51
    %53 = vrot.lane.b32.xlu0 %v48, 1
    %v54 = vpop.permute.xlu0 %53
    %v55 = vlaneseq
    %v56 = vand.u32 %v55, 127
    %vm57 = vcmp.lt.s32.totalorder %v56, 1
    %v58 = vsel %vm57, %v52, %v54
    %v59 = vsel %vm57, %v54, %v52
    %v61 = vlaneseq
    %v62 = vshrl.u32 %v61, 7
    %v63 = vsub.s32 0, %v62
    %v64 = vrot.slane %v39, %v63
    %v65 = vlaneseq
    %v66 = vshrl.u32 %v65, 7
    %v67 = vsub.s32 4, %v66
    %v68 = vrot.slane %v39, %v67
    %v71 = vlaneseq
    %v72 = vshrl.u32 %v71, 7
    %v73 = vsub.s32 0, %v72
    %v74 = vrot.slane %v64, %v73
    %v75 = vlaneseq
    %v76 = vshrl.u32 %v75, 7
    %v77 = vsub.s32 0, %v76
    %v78 = vrot.slane %v68, %v77
    %v79 = vmul.f32 %v59, %v74
    %v80 = vmul.f32 %v58, %v78
    %81 = vrot.lane.b32.xlu0 %v47, 127
    %v82 = vpop.permute.xlu0 %81
    %83 = vrot.lane.b32.xlu0 %v48, 127
    %v84 = vpop.permute.xlu0 %83
    %vm85 = vcmp.lt.s32.totalorder %v56, 127
    %v86 = vsel %vm85, %v82, %v84
    %v87 = vsel %vm85, %v84, %v82
    %v88 = vlaneseq
    %v89 = vshrl.u32 %v88, 7
    %v90 = vsub.s32 1, %v89
    %v91 = vrot.slane %v39, %v90
    %v92 = vlaneseq
    %v93 = vshrl.u32 %v92, 7
    %v94 = vsub.s32 5, %v93
    %v95 = vrot.slane %v39, %v94
    %v98 = vlaneseq
    %v99 = vshrl.u32 %v98, 7
    %v100 = vsub.s32 1, %v99
    %v101 = vrot.slane %v91, %v100
    %v102 = vlaneseq
    %v103 = vshrl.u32 %v102, 7
    %v104 = vsub.s32 1, %v103
    %v105 = vrot.slane %v95, %v104
    %v106 = vmul.f32 %v86, %v101
    %v107 = vmul.f32 %v87, %v105
    %s108 = sld [smem:[#allocation2 + $0x3]]
    %v109 = vstv %s108
    %v110 = vmul.f32 %v109, %v79
    %v111 = vmul.f32 %v109, %v80
    %s112 = sld [smem:[#allocation2 + $0x4]]
    %v113 = vstv %s112
    %v114 = vmul.f32 %v113, %v38
    %v117 = vunpack.c.l.s4 1983009808
    %v118 = vunpack.c.0.s8 %v117
    %v119 = vlaneseq
    %v120 = vshrl.u32 %v119, 7
    %v121 = vsub.s32 %v118, %v120
    %v122 = vrot.slane %v114, %v121
    %v123 = vcombine.high %v122, %v122
    %v126 = vadd.f32 %v110, %v122
    %v127 = vadd.f32 %v111, %v123
    %s128 = sld [smem:[#allocation2 + $0x5]]
    %v129 = vstv %s128
    %v130 = vmul.f32 %v129, %v106
    %v131 = vmul.f32 %v129, %v107
    %v132 = vadd.f32 %v126, %v130
    %v133 = vadd.f32 %v127, %v131
    %s134 = sld [smem:[#allocation2 + $0x9]]
    %v135 = vstv %s134
    %v136 = vadd.f32 %v132, %v135
    %v137 = vadd.f32 %v133, %v135
    %s138 = sld [smem:[#allocation2]]
    %v139 = vstv %s138
    %v140 = vmul.f32 %v139, %v79
    %v141 = vmul.f32 %v139, %v80
    %s142 = sld [smem:[#allocation2 + $0x1]]
    %v143 = vstv %s142
    %v144 = vmul.f32 %v143, %v38
    %v147 = vunpack.c.l.s4 1983009808
    %v148 = vunpack.c.0.s8 %v147
    %v149 = vlaneseq
    %v150 = vshrl.u32 %v149, 7
    %v151 = vsub.s32 %v148, %v150
    %v152 = vrot.slane %v144, %v151
    %v153 = vcombine.high %v152, %v152
    %v156 = vadd.f32 %v140, %v152
    %v157 = vadd.f32 %v141, %v153
    %s158 = sld [smem:[#allocation2 + $0x2]]
    %v159 = vstv %s158
    %v160 = vmul.f32 %v159, %v106
    %v161 = vmul.f32 %v159, %v107
    %v162 = vadd.f32 %v156, %v160
    %v163 = vadd.f32 %v157, %v161
    %164 = vrot.lane.b32.xlu0 %v162, 16
    %v165 = vpop.permute.xlu0 %164
    %166 = vrot.lane.b32.xlu0 %v163, 16
    %v167 = vpop.permute.xlu0 %166
    %vm168 = vcmp.lt.s32.totalorder %v56, 16
    %v169 = vsel %vm168, %v165, %v167
    %v170 = vsel %vm168, %v167, %v165
    %v171 = vlaneseq
    %v172 = vshrl.u32 %v171, 7
    %v173 = vsub.s32 2, %v172
    %v174 = vrot.slane %v39, %v173
    %v175 = vlaneseq
    %v176 = vshrl.u32 %v175, 7
    %v177 = vsub.s32 6, %v176
    %v178 = vrot.slane %v39, %v177
    %v181 = vlaneseq
    %v182 = vshrl.u32 %v181, 7
    %v183 = vsub.s32 2, %v182
    %v184 = vrot.slane %v174, %v183
    %v185 = vlaneseq
    %v186 = vshrl.u32 %v185, 7
    %v187 = vsub.s32 2, %v186
    %v188 = vrot.slane %v178, %v187
    %v189 = vmul.f32 %v170, %v184
    %v190 = vmul.f32 %v169, %v188
    %v191 = vadd.f32 %v136, %v189
    %v192 = vadd.f32 %v137, %v190
    %s193 = sld [smem:[#allocation2 + $0x6]]
    %v194 = vstv %s193
    %v195 = vmul.f32 %v194, %v79
    %v196 = vmul.f32 %v194, %v80
    %s197 = sld [smem:[#allocation2 + $0x7]]
    %v198 = vstv %s197
    %v199 = vmul.f32 %v198, %v38
    %v202 = vunpack.c.l.s4 1983009808
    %v203 = vunpack.c.0.s8 %v202
    %v204 = vlaneseq
    %v205 = vshrl.u32 %v204, 7
    %v206 = vsub.s32 %v203, %v205
    %v207 = vrot.slane %v199, %v206
    %v208 = vcombine.high %v207, %v207
    %v211 = vadd.f32 %v195, %v207
    %v212 = vadd.f32 %v196, %v208
    %s213 = sld [smem:[#allocation2 + $0x8]]
    %v214 = vstv %s213
    %v215 = vmul.f32 %v214, %v106
    %v216 = vmul.f32 %v214, %v107
    %v217 = vadd.f32 %v211, %v215
    %v218 = vadd.f32 %v212, %v216
    %219 = vrot.lane.b32.xlu0 %v217, 112
    %v220 = vpop.permute.xlu0 %219
    %221 = vrot.lane.b32.xlu0 %v218, 112
    %v222 = vpop.permute.xlu0 %221
    %vm223 = vcmp.lt.s32.totalorder %v56, 112
    %v224 = vsel %vm223, %v220, %v222
    %v225 = vsel %vm223, %v222, %v220
    %v226 = vlaneseq
    %v227 = vshrl.u32 %v226, 7
    %v228 = vsub.s32 3, %v227
    %v229 = vrot.slane %v39, %v228
    %v230 = vlaneseq
    %v231 = vshrl.u32 %v230, 7
    %v232 = vsub.s32 7, %v231
    %v233 = vrot.slane %v39, %v232
    %v236 = vlaneseq
    %v237 = vshrl.u32 %v236, 7
    %v238 = vsub.s32 3, %v237
    %v239 = vrot.slane %v229, %v238
    %v240 = vlaneseq
    %v241 = vshrl.u32 %v240, 7
    %v242 = vsub.s32 3, %v241
    %v243 = vrot.slane %v233, %v242
    %v244 = vmul.f32 %v224, %v239
    %v245 = vmul.f32 %v225, %v243
    %v246 = vadd.f32 %v191, %v244
    %v247 = vadd.f32 %v192, %v245
    %v250 = vcombine.low %v246, %v247
    %v252 = vunpack.c.l.s4 1983009808
    %v253 = vunpack.c.0.s8 %v252
    %v254 = vlaneseq
    %v255 = vshrl.u32 %v254, 7
    %v256 = vsub.s32 %v253, %v255
    %v257 = vrot.slane %v250, %v256
    %259 = vst [vmem:[#allocation7] sm:$0xf] %v257
    // Predicated region
    $region22: #{tpu_custom_call.1} parent=1 // pred_check
      _
    $region23: #{tpu_custom_call.1} parent=1 // pred_check_branch
      %261 = sbr.rel (0) target = $region25
    $region24: #{tpu_custom_call.1} parent=1 // pred_region
      %s263 = ssub.s32 64, 64
      %264 = vsyncadd [#allocation4], %s263
      %s266 = sshll.u32 [#allocation7], 4
      %s267 = int_to_ptr.vmem [resolvable:$true] %s266
      %269 = dma.vmem_to_hbm [thread:$0]  %s267, 64, %s3, [#allocation4]
    $region25: #{tpu_custom_call.1} parent=1 // pred_fallthru
      _
    // Predicated region
    $region26: #{tpu_custom_call.1} parent=1 // pred_check
      _
    $region27: #{tpu_custom_call.1} parent=1 // pred_check_branch
      %271 = sbr.rel (0) target = $region29
    $region28: #{tpu_custom_call.1} parent=1 // pred_region
      %272 = dma.done [#allocation4], 64
    $region29: #{tpu_custom_call.1} parent=1 // pred_fallthru
      _
    %273 = vsyncpa [#allocation3], 1
    %274 = vsyncpa [#allocation4], 1
    %275 = vsyncpa [#allocation5], 1

</llo_original>
